<compile_context>
chip_gen: v7x
topology: tpu7x:2x2x1
jax: 0.10.0
libtpu: 0.0.40
codegen_flags: <defaults>
</compile_context>

<pallas_src>
import functools

import jax
import jax.numpy as jnp
from jax.experimental import pallas as pl
from jax.experimental.pallas import tpu as pltpu


def _round_up(v, m):
    return ((v + m - 1) // m) * m


def _ffn_kernel(x_ref, w1_ref, b1_ref, w2_ref, b2_ref, gamma_ref, beta_ref,
                o_ref, acc_ref, *, eps, d_valid):
    """One (row-tile, hidden-slab) step. acc_ref accumulates the second matmul
    in f32 across hidden slabs; bias2 + residual + layernorm happen on the last
    slab via pl.when."""
    k = pl.program_id(1)

    @pl.when(k == 0)
    def _init():
        acc_ref[...] = jnp.zeros_like(acc_ref)

    x = x_ref[...]
    # MXU fast path: feed the MXU in the weight dtype (bf16), accumulate in f32.
    x_mx = x if x.dtype == w1_ref.dtype else x.astype(w1_ref.dtype)

    h = jnp.dot(x_mx, w1_ref[...], preferred_element_type=jnp.float32)
    h = jnp.maximum(h + b1_ref[...], 0.0)                       # bias + relu (f32)
    acc_ref[...] += jnp.dot(h.astype(w2_ref.dtype), w2_ref[...],
                            preferred_element_type=jnp.float32)

    @pl.when(k == pl.num_programs(1) - 1)
    def _finalize():
        # dropout: identity at inference (torch nn.Dropout in eval mode).
        # TODO(synk): training-mode dropout (stateful PRNG mask) not implemented.
        y = acc_ref[...] + b2_ref[...] + x.astype(jnp.float32)   # + residual

        d_pad = y.shape[-1]
        inv_d = jnp.float32(1.0 / d_valid)
        # Padded lanes of y are exact zeros, so the plain sum already only
        # covers the valid columns.
        mean = jnp.sum(y, axis=-1, keepdims=True) * inv_d
        centered = y - mean
        if d_pad != d_valid:
            # (1, d_pad) lane mask; broadcasts for free in the where.
            lane = jax.lax.broadcasted_iota(jnp.int32, (1, d_pad), 1)
            centered = jnp.where(lane < d_valid, centered, 0.0)
        var = jnp.sum(centered * centered, axis=-1, keepdims=True) * inv_d
        out = centered * jax.lax.rsqrt(var + eps) * gamma_ref[...] + beta_ref[...]
        o_ref[...] = out.astype(o_ref.dtype)


def positionwise_feed_forward(x, w1, b1, w2, b2, gamma, beta, *,
                              eps=1e-6, tile_rows=None,
                              mxu_dtype=jnp.bfloat16):
    """x: (batch, seq, d_input). Weights stored (in, out). Returns x's shape/dtype."""
    batch, seq, d_in = x.shape
    d_hid = w1.shape[1]
    rows = batch * seq

    x_item = jnp.dtype(x.dtype).itemsize
    w_item = jnp.dtype(mxu_dtype).itemsize
    sublane = {4: 8, 2: 16, 1: 32}.get(x_item, 8)

    # ---- generation-aware budgets -------------------------------------------
    try:
        vmem_cap = int(pltpu.get_tpu_info().vmem_capacity_bytes)
    except Exception:
        vmem_cap = 64 << 20                    # conservative (v7x per-TensorCore)
    if tile_rows is None:
        tile_rows = 512 if vmem_cap >= (96 << 20) else 256   # v5e/v6e vs v7x

    # ---- lane-dense feature dims (multiples of 128) --------------------------
    d_pad = _round_up(d_in, 128)
    h_pad = _round_up(d_hid, 128)

    # Hidden-dim split (trailing "arbitrary" grid axis) when the resident
    # weights would not comfortably fit in VMEM (matters on v7x's 64 MiB).
    weight_budget = int(vmem_cap * 0.40)
    if 2 * d_pad * h_pad * w_item <= weight_budget:
        num_k, h_tile = 1, h_pad
    else:
        per_col = 2 * (2 * d_pad) * w_item     # double-buffered w1 col + w2 row
        max_h_tile = max(128, (weight_budget // per_col) // 128 * 128)
        num_k = -(-h_pad // max_h_tile)
        h_tile = _round_up(-(-h_pad // num_k), 128)
        h_pad = num_k * h_tile                 # extra zero padding is exact

    # ---- row tile -------------------------------------------------------------
    tile = _round_up(max(sublane, min(tile_rows, _round_up(rows, sublane))),
                     sublane)

    def vmem_estimate(t):
        n_wbuf = 1 if num_k == 1 else 2
        return (4 * t * d_pad * x_item                      # x + out, double-buffered
                + n_wbuf * 2 * d_pad * h_tile * w_item      # w1 + w2 slabs
                + t * d_pad * 4                             # f32 accumulator scratch
                + 2 * t * h_tile * 4                        # f32 hidden temps
                + 3 * t * d_pad * 4                         # f32 LN temps
                + 8 * (h_tile + 3 * d_pad) * 4)             # biases / LN params

    while tile > 2 * sublane and vmem_estimate(tile) > int(vmem_cap * 0.70):
        tile = _round_up(tile // 2, sublane)

    # Prefer a row tile that divides rows: avoids the wrapper-side jnp.pad and
    # output-slice HBM copies of the activation for common shapes.
    if rows % tile != 0:
        cand = (tile // sublane) * sublane
        while cand >= sublane and rows % cand != 0:
            cand -= sublane
        if cand >= sublane and cand * 4 >= tile:
            tile = cand
    rows_pad = _round_up(rows, tile)

    def pad2(a, r, c):
        pr, pc = r - a.shape[0], c - a.shape[1]
        return a if (pr == 0 and pc == 0) else jnp.pad(a, ((0, pr), (0, pc)))

    x2d = pad2(x.reshape(rows, d_in), rows_pad, d_pad)
    w1p = pad2(w1.astype(mxu_dtype), d_pad, h_pad)
    w2p = pad2(w2.astype(mxu_dtype), h_pad, d_pad)
    # Small params stay f32 for the elementwise path, shaped (1, N) to broadcast.
    b1p = pad2(b1.astype(jnp.float32).reshape(1, d_hid), 1, h_pad)
    b2p = pad2(b2.astype(jnp.float32).reshape(1, d_in), 1, d_pad)
    gp = pad2(gamma.astype(jnp.float32).reshape(1, d_in), 1, d_pad)
    bp = pad2(beta.astype(jnp.float32).reshape(1, d_in), 1, d_pad)

    grid = (rows_pad // tile, num_k)
    vmem_limit = int(min(int(vmem_cap * 0.85),
                         max(16 << 20, int(vmem_estimate(tile) * 1.25))))

    kernel = functools.partial(_ffn_kernel, eps=float(eps), d_valid=d_in)

    def run(single_buffer_invariants):
        def spec(shape, idx, invariant=False):
            if invariant and single_buffer_invariants:
                # Constant index_map -> double-buffering buys nothing; halve VMEM.
                return pl.BlockSpec(shape, idx, pipeline_mode=pl.Buffered(1))
            return pl.BlockSpec(shape, idx)

        return pl.pallas_call(
            kernel,
            out_shape=jax.ShapeDtypeStruct((rows_pad, d_pad), x.dtype),
            grid_spec=pltpu.PrefetchScalarGridSpec(
                num_scalar_prefetch=0,
                grid=grid,
                in_specs=[
                    spec((tile, d_pad), lambda i, k: (i, 0)),                # x tile
                    spec((d_pad, h_tile), lambda i, k: (0, k),
                         invariant=(num_k == 1)),                            # w1 slab
                    spec((1, h_tile), lambda i, k: (0, k),
                         invariant=(num_k == 1)),                            # b1 slab
                    spec((h_tile, d_pad), lambda i, k: (k, 0),
                         invariant=(num_k == 1)),                            # w2 slab
                    spec((1, d_pad), lambda i, k: (0, 0), invariant=True),   # b2
                    spec((1, d_pad), lambda i, k: (0, 0), invariant=True),   # gamma
                    spec((1, d_pad), lambda i, k: (0, 0), invariant=True),   # beta
                ],
                out_specs=pl.BlockSpec((tile, d_pad), lambda i, k: (i, 0)),
                scratch_shapes=[pltpu.VMEM((tile, d_pad), jnp.float32)],
            ),
            compiler_params=pltpu.CompilerParams(
                dimension_semantics=("parallel", "arbitrary"),
                vmem_limit_bytes=vmem_limit,
            ),
        )(x2d, w1p, b1p, w2p, b2p, gp, bp)

    try:
        out2d = run(single_buffer_invariants=True)
    except Exception:
        # Fallback for environments where pipeline_mode=pl.Buffered(1) is not
        # accepted by the pallas_call pipeline.
        out2d = run(single_buffer_invariants=False)

    if rows_pad == rows and d_pad == d_in:
        return out2d.reshape(batch, seq, d_in)
    return out2d[:rows, :d_in].reshape(batch, seq, d_in)


if __name__ == "__main__":
    # Small shapes consistent with the module's forward.
    batch, seq = 2, 8
    d_input, d_hidden = 32, 64

    key = jax.random.PRNGKey(0)
    kx, kw1, kb1, kw2, kb2 = jax.random.split(key, 5)

    x = jax.random.normal(kx, (batch, seq, d_input), dtype=jnp.float32)

    # Weights stored as (in, out), i.e. transposed relative to torch.nn.Linear.
    w1 = jax.random.normal(kw1, (d_input, d_hidden), jnp.float32) * 0.05
    b1 = jax.random.normal(kb1, (d_hidden,), jnp.float32) * 0.01
    w2 = jax.random.normal(kw2, (d_hidden, d_input), jnp.float32) * 0.05
    b2 = jax.random.normal(kb2, (d_input,), jnp.float32) * 0.01
    gamma = jnp.ones((d_input,), jnp.float32)
    beta = jnp.zeros((d_input,), jnp.float32)

    out = positionwise_feed_forward(x, w1, b1, w2, b2, gamma, beta)
    out = jax.block_until_ready(out)

    # Reference matching the kernel's MXU path (bf16 operands, f32 accumulate).
    cd = jnp.bfloat16
    h_ref = jnp.maximum(
        jnp.dot(x.astype(cd), w1.astype(cd),
                preferred_element_type=jnp.float32) + b1, 0.0)
    y_ref = jnp.dot(h_ref.astype(cd), w2.astype(cd),
                    preferred_element_type=jnp.float32) + b2 + x
    mu = y_ref.mean(-1, keepdims=True)
    var = ((y_ref - mu) ** 2).mean(-1, keepdims=True)
    ref = (y_ref - mu) * jax.lax.rsqrt(var + 1e-6) * gamma + beta

    # Full-f32 reference (exact module semantics) as a looser sanity check.
    h32 = jnp.maximum(x @ w1 + b1, 0.0)
    y32 = h32 @ w2 + b2 + x
    mu32 = y32.mean(-1, keepdims=True)
    var32 = ((y32 - mu32) ** 2).mean(-1, keepdims=True)
    ref32 = (y32 - mu32) * jax.lax.rsqrt(var32 + 1e-6) * gamma + beta

    assert out.shape == x.shape and out.dtype == x.dtype
    assert jnp.allclose(out, ref, atol=2e-3, rtol=2e-3), "mismatch vs bf16 reference"
    assert jnp.allclose(out, ref32, atol=5e-2, rtol=5e-2), "mismatch vs f32 reference"

    print("KERNEL_OK")
</pallas_src>

<mosaic_0001>
module attributes {stable_mosaic.version = 11 : i64} {
  func.func @_ffn_kernel(%arg0: i32, %arg1: i32, %arg2: memref<16x128xf32, #tpu.memory_space<vmem>>, %arg3: memref<128x128xbf16, #tpu.memory_space<vmem>>, %arg4: memref<1x128xf32, #tpu.memory_space<vmem>>, %arg5: memref<128x128xbf16, #tpu.memory_space<vmem>>, %arg6: memref<1x128xf32, #tpu.memory_space<vmem>>, %arg7: memref<1x128xf32, #tpu.memory_space<vmem>>, %arg8: memref<1x128xf32, #tpu.memory_space<vmem>>, %arg9: memref<16x128xf32, #tpu.memory_space<vmem>>, %arg10: memref<16x128xf32, #tpu.memory_space<vmem>>) attributes {dimension_semantics = [#tpu.dimension_semantics<parallel>, #tpu.dimension_semantics<arbitrary>], iteration_bounds = array<i64: 1, 1>, scalar_prefetch = 0 : i64, scratch_operands = 1 : i64, tpu.core_type = #tpu.core_type<tc>, window_params = [{transform_indices = @transform_0, window_bounds = array<i64: 16, 128>}, {pipeline_mode = #tpu.pipeline_mode<synchronous>, transform_indices = @transform_1, window_bounds = array<i64: 128, 128>}, {pipeline_mode = #tpu.pipeline_mode<synchronous>, transform_indices = @transform_2, window_bounds = array<i64: 1, 128>}, {pipeline_mode = #tpu.pipeline_mode<synchronous>, transform_indices = @transform_3, window_bounds = array<i64: 128, 128>}, {pipeline_mode = #tpu.pipeline_mode<synchronous>, transform_indices = @transform_4, window_bounds = array<i64: 1, 128>}, {pipeline_mode = #tpu.pipeline_mode<synchronous>, transform_indices = @transform_5, window_bounds = array<i64: 1, 128>}, {pipeline_mode = #tpu.pipeline_mode<synchronous>, transform_indices = @transform_6, window_bounds = array<i64: 1, 128>}, {transform_indices = @transform_7, window_bounds = array<i64: 16, 128>}]} {
    %c0_i32 = arith.constant 0 : i32
    %0 = arith.cmpi eq, %arg1, %c0_i32 : i32
    %1 = arith.extui %0 : i1 to i32
    %c0_i32_0 = arith.constant 0 : i32
    %2 = arith.cmpi ne, %1, %c0_i32_0 : i32
    scf.if %2 {
      %cst_16 = arith.constant 0.000000e+00 : f32
      %21 = vector.broadcast %cst_16 : f32 to vector<16x128xf32>
      %c0_17 = arith.constant 0 : index
      %c0_18 = arith.constant 0 : index
      %22 = vector.load %arg10[%c0_17, %c0_18] : memref<16x128xf32, #tpu.memory_space<vmem>>, vector<16x128xf32>
      tpu.vector_store %arg10[%c0_17, %c0_18], %21 {strides = array<i32>} : memref<16x128xf32, #tpu.memory_space<vmem>>, vector<16x128xf32>,
    } else {
    }
    %c0 = arith.constant 0 : index
    %c0_1 = arith.constant 0 : index
    %3 = vector.load %arg2[%c0, %c0_1] : memref<16x128xf32, #tpu.memory_space<vmem>>, vector<16x128xf32>
    %4 = arith.truncf %3 : vector<16x128xf32> to vector<16x128xbf16>
    %c0_2 = arith.constant 0 : index
    %c0_3 = arith.constant 0 : index
    %5 = vector.load %arg3[%c0_2, %c0_3] : memref<128x128xbf16, #tpu.memory_space<vmem>>, vector<128x128xbf16>
    %cst = arith.constant dense<0.000000e+00> : vector<16x128xf32>
    %6 = tpu.matmul %4, %5, %cst {dimension_numbers = #tpu.dot_dimension_numbers<[1], [0], [0], [1], [0, 0, 1, 1], [], []>} : vector<16x128xbf16>, vector<128x128xbf16>, vector<16x128xf32> -> vector<16x128xf32>
    %c0_4 = arith.constant 0 : index
    %c0_5 = arith.constant 0 : index
    %7 = vector.load %arg4[%c0_4, %c0_5] : memref<1x128xf32, #tpu.memory_space<vmem>>, vector<1x128xf32>
    %8 = vector.broadcast %7 : vector<1x128xf32> to vector<16x128xf32>
    %9 = arith.addf %6, %8 : vector<16x128xf32>
    %cst_6 = arith.constant 0.000000e+00 : f32
    %10 = vector.broadcast %cst_6 : f32 to vector<16x128xf32>
    %11 = arith.maximumf %9, %10 : vector<16x128xf32>
    %c0_7 = arith.constant 0 : index
    %c0_8 = arith.constant 0 : index
    %12 = vector.load %arg10[%c0_7, %c0_8] : memref<16x128xf32, #tpu.memory_space<vmem>>, vector<16x128xf32>
    %13 = arith.truncf %11 : vector<16x128xf32> to vector<16x128xbf16>
    %c0_9 = arith.constant 0 : index
    %c0_10 = arith.constant 0 : index
    %14 = vector.load %arg5[%c0_9, %c0_10] : memref<128x128xbf16, #tpu.memory_space<vmem>>, vector<128x128xbf16>
    %cst_11 = arith.constant dense<0.000000e+00> : vector<16x128xf32>
    %15 = tpu.matmul %13, %14, %cst_11 {dimension_numbers = #tpu.dot_dimension_numbers<[1], [0], [0], [1], [0, 0, 1, 1], [], []>} : vector<16x128xbf16>, vector<128x128xbf16>, vector<16x128xf32> -> vector<16x128xf32>
    %16 = arith.addf %12, %15 : vector<16x128xf32>
    %c0_12 = arith.constant 0 : index
    %c0_13 = arith.constant 0 : index
    %17 = vector.load %arg10[%c0_12, %c0_13] : memref<16x128xf32, #tpu.memory_space<vmem>>, vector<16x128xf32>
    tpu.vector_store %arg10[%c0_12, %c0_13], %16 {strides = array<i32>} : memref<16x128xf32, #tpu.memory_space<vmem>>, vector<16x128xf32>,
    %c0_i32_14 = arith.constant 0 : i32
    %18 = arith.cmpi eq, %arg1, %c0_i32_14 : i32
    %19 = arith.extui %18 : i1 to i32
    %c0_i32_15 = arith.constant 0 : i32
    %20 = arith.cmpi ne, %19, %c0_i32_15 : i32
    scf.if %20 {
      %c0_16 = arith.constant 0 : index
      %c0_17 = arith.constant 0 : index
      %21 = vector.load %arg10[%c0_16, %c0_17] : memref<16x128xf32, #tpu.memory_space<vmem>>, vector<16x128xf32>
      %c0_18 = arith.constant 0 : index
      %c0_19 = arith.constant 0 : index
      %22 = vector.load %arg6[%c0_18, %c0_19] : memref<1x128xf32, #tpu.memory_space<vmem>>, vector<1x128xf32>
      %23 = vector.broadcast %22 : vector<1x128xf32> to vector<16x128xf32>
      %24 = arith.addf %21, %23 : vector<16x128xf32>
      %25 = arith.addf %24, %3 : vector<16x128xf32>
      %cst_20 = arith.constant dense<0.000000e+00> : vector<16xf32>
      %26 = vector.multi_reduction <add>, %25, %cst_20 [1] : vector<16x128xf32> to vector<16xf32>
      %27 = vector.shape_cast %26 : vector<16xf32> to vector<16x1xf32>
      %cst_21 = arith.constant 3.125000e-02 : f32
      %28 = vector.broadcast %cst_21 : f32 to vector<16x1xf32>
      %29 = arith.mulf %27, %28 : vector<16x1xf32>
      %30 = vector.broadcast %29 : vector<16x1xf32> to vector<16x128xf32>
      %31 = arith.subf %25, %30 : vector<16x128xf32>
      %32 = tpu.iota {dimensions = array<i32: 1>} : vector<1x128xi32>
      %c32_i32 = arith.constant 32 : i32
      %33 = vector.broadcast %c32_i32 : i32 to vector<1x128xi32>
      %34 = arith.cmpi slt, %32, %33 : vector<1x128xi32>
      %cst_22 = arith.constant 0.000000e+00 : f32
      %35 = vector.shape_cast %34 : vector<1x128xi1> to vector<1x128xi1>
      %36 = vector.broadcast %35 : vector<1x128xi1> to vector<16x128xi1>
      %37 = vector.broadcast %cst_22 : f32 to vector<16x128xf32>
      %38 = arith.select %36, %31, %37 : vector<16x128xi1>, vector<16x128xf32>
      %39 = arith.mulf %38, %38 : vector<16x128xf32>
      %cst_23 = arith.constant dense<0.000000e+00> : vector<16xf32>
      %40 = vector.multi_reduction <add>, %39, %cst_23 [1] : vector<16x128xf32> to vector<16xf32>
      %41 = vector.shape_cast %40 : vector<16xf32> to vector<16x1xf32>
      %cst_24 = arith.constant 3.125000e-02 : f32
      %42 = vector.broadcast %cst_24 : f32 to vector<16x1xf32>
      %43 = arith.mulf %41, %42 : vector<16x1xf32>
      %cst_25 = arith.constant 9.99999997E-7 : f32
      %44 = vector.broadcast %cst_25 : f32 to vector<16x1xf32>
      %45 = arith.addf %43, %44 : vector<16x1xf32>
      %46 = math.rsqrt %45 : vector<16x1xf32>
      %47 = vector.broadcast %46 : vector<16x1xf32> to vector<16x128xf32>
      %48 = arith.mulf %38, %47 : vector<16x128xf32>
      %c0_26 = arith.constant 0 : index
      %c0_27 = arith.constant 0 : index
      %49 = vector.load %arg7[%c0_26, %c0_27] : memref<1x128xf32, #tpu.memory_space<vmem>>, vector<1x128xf32>
      %50 = vector.broadcast %49 : vector<1x128xf32> to vector<16x128xf32>
      %51 = arith.mulf %48, %50 : vector<16x128xf32>
      %c0_28 = arith.constant 0 : index
      %c0_29 = arith.constant 0 : index
      %52 = vector.load %arg8[%c0_28, %c0_29] : memref<1x128xf32, #tpu.memory_space<vmem>>, vector<1x128xf32>
      %53 = vector.broadcast %52 : vector<1x128xf32> to vector<16x128xf32>
      %54 = arith.addf %51, %53 : vector<16x128xf32>
      %c0_30 = arith.constant 0 : index
      %c0_31 = arith.constant 0 : index
      %55 = vector.load %arg9[%c0_30, %c0_31] : memref<16x128xf32, #tpu.memory_space<vmem>>, vector<16x128xf32>
      tpu.vector_store %arg9[%c0_30, %c0_31], %54 {strides = array<i32>} : memref<16x128xf32, #tpu.memory_space<vmem>>, vector<16x128xf32>,
    } else {
    }
    return
  }
  func.func @transform_0(%arg0: i32, %arg1: i32) -> (i32, i32) {
    %c0_i32 = arith.constant 0 : i32
    %c0_i32_0 = arith.constant 0 : i32
    return %arg0, %c0_i32 : i32, i32
  }
  func.func @transform_1(%arg0: i32, %arg1: i32) -> (i32, i32) {
    %c0_i32 = arith.constant 0 : i32
    %c0_i32_0 = arith.constant 0 : i32
    return %c0_i32, %arg1 : i32, i32
  }
  func.func @transform_2(%arg0: i32, %arg1: i32) -> (i32, i32) {
    %c0_i32 = arith.constant 0 : i32
    %c0_i32_0 = arith.constant 0 : i32
    return %c0_i32, %arg1 : i32, i32
  }
  func.func @transform_3(%arg0: i32, %arg1: i32) -> (i32, i32) {
    %c0_i32 = arith.constant 0 : i32
    %c0_i32_0 = arith.constant 0 : i32
    return %arg1, %c0_i32 : i32, i32
  }
  func.func @transform_4(%arg0: i32, %arg1: i32) -> (i32, i32) {
    %c0_i32 = arith.constant 0 : i32
    %c0_i32_0 = arith.constant 0 : i32
    %c0_i32_1 = arith.constant 0 : i32
    return %c0_i32, %c0_i32_0 : i32, i32
  }
  func.func @transform_5(%arg0: i32, %arg1: i32) -> (i32, i32) {
    %c0_i32 = arith.constant 0 : i32
    %c0_i32_0 = arith.constant 0 : i32
    %c0_i32_1 = arith.constant 0 : i32
    return %c0_i32, %c0_i32_0 : i32, i32
  }
  func.func @transform_6(%arg0: i32, %arg1: i32) -> (i32, i32) {
    %c0_i32 = arith.constant 0 : i32
    %c0_i32_0 = arith.constant 0 : i32
    %c0_i32_1 = arith.constant 0 : i32
    return %c0_i32, %c0_i32_0 : i32, i32
  }
  func.func @transform_7(%arg0: i32, %arg1: i32) -> (i32, i32) {
    %c0_i32 = arith.constant 0 : i32
    %c0_i32_0 = arith.constant 0 : i32
    return %arg0, %c0_i32 : i32, i32
  }
}

module attributes {stable_mosaic.version = 11 : i64} {
  func.func @_ffn_kernel(%arg0: i32, %arg1: i32, %arg2: memref<16x128xf32, #tpu.memory_space<vmem>>, %arg3: memref<128x128xbf16, #tpu.memory_space<vmem>>, %arg4: memref<1x128xf32, #tpu.memory_space<vmem>>, %arg5: memref<128x128xbf16, #tpu.memory_space<vmem>>, %arg6: memref<1x128xf32, #tpu.memory_space<vmem>>, %arg7: memref<1x128xf32, #tpu.memory_space<vmem>>, %arg8: memref<1x128xf32, #tpu.memory_space<vmem>>, %arg9: memref<16x128xf32, #tpu.memory_space<vmem>>, %arg10: memref<16x128xf32, #tpu.memory_space<vmem>>) attributes {dimension_semantics = [#tpu.dimension_semantics<parallel>, #tpu.dimension_semantics<arbitrary>], iteration_bounds = array<i64: 1, 1>, scalar_prefetch = 0 : i64, scratch_operands = 1 : i64, tpu.core_type = #tpu.core_type<tc>, window_params = [{transform_indices = @transform_0, window_bounds = array<i64: 16, 128>}, {transform_indices = @transform_1, window_bounds = array<i64: 128, 128>}, {transform_indices = @transform_2, window_bounds = array<i64: 1, 128>}, {transform_indices = @transform_3, window_bounds = array<i64: 128, 128>}, {pipeline_mode = #tpu.pipeline_mode<synchronous>, transform_indices = @transform_4, window_bounds = array<i64: 1, 128>}, {pipeline_mode = #tpu.pipeline_mode<synchronous>, transform_indices = @transform_5, window_bounds = array<i64: 1, 128>}, {pipeline_mode = #tpu.pipeline_mode<synchronous>, transform_indices = @transform_6, window_bounds = array<i64: 1, 128>}, {transform_indices = @transform_7, window_bounds = array<i64: 16, 128>}]} {
    %c0_i32 = arith.constant 0 : i32
    %0 = arith.cmpi eq, %arg1, %c0_i32 : i32
    %1 = arith.extui %0 : i1 to i32
    %c0_i32_0 = arith.constant 0 : i32
    %2 = arith.cmpi ne, %1, %c0_i32_0 : i32
    scf.if %2 {
      %cst_16 = arith.constant 0.000000e+00 : f32
      %21 = vector.broadcast %cst_16 : f32 to vector<16x128xf32>
      %c0_17 = arith.constant 0 : index
      %c0_18 = arith.constant 0 : index
      %22 = vector.load %arg10[%c0_17, %c0_18] : memref<16x128xf32, #tpu.memory_space<vmem>>, vector<16x128xf32>
      tpu.vector_store %arg10[%c0_17, %c0_18], %21 {strides = array<i32>} : memref<16x128xf32, #tpu.memory_space<vmem>>, vector<16x128xf32>,
    } else {
    }
    %c0 = arith.constant 0 : index
    %c0_1 = arith.constant 0 : index
    %3 = vector.load %arg2[%c0, %c0_1] : memref<16x128xf32, #tpu.memory_space<vmem>>, vector<16x128xf32>
    %4 = arith.truncf %3 : vector<16x128xf32> to vector<16x128xbf16>
    %c0_2 = arith.constant 0 : index
    %c0_3 = arith.constant 0 : index
    %5 = vector.load %arg3[%c0_2, %c0_3] : memref<128x128xbf16, #tpu.memory_space<vmem>>, vector<128x128xbf16>
    %cst = arith.constant dense<0.000000e+00> : vector<16x128xf32>
    %6 = tpu.matmul %4, %5, %cst {dimension_numbers = #tpu.dot_dimension_numbers<[1], [0], [0], [1], [0, 0, 1, 1], [], []>} : vector<16x128xbf16>, vector<128x128xbf16>, vector<16x128xf32> -> vector<16x128xf32>
    %c0_4 = arith.constant 0 : index
    %c0_5 = arith.constant 0 : index
    %7 = vector.load %arg4[%c0_4, %c0_5] : memref<1x128xf32, #tpu.memory_space<vmem>>, vector<1x128xf32>
    %8 = vector.broadcast %7 : vector<1x128xf32> to vector<16x128xf32>
    %9 = arith.addf %6, %8 : vector<16x128xf32>
    %cst_6 = arith.constant 0.000000e+00 : f32
    %10 = vector.broadcast %cst_6 : f32 to vector<16x128xf32>
    %11 = arith.maximumf %9, %10 : vector<16x128xf32>
    %c0_7 = arith.constant 0 : index
    %c0_8 = arith.constant 0 : index
    %12 = vector.load %arg10[%c0_7, %c0_8] : memref<16x128xf32, #tpu.memory_space<vmem>>, vector<16x128xf32>
    %13 = arith.truncf %11 : vector<16x128xf32> to vector<16x128xbf16>
    %c0_9 = arith.constant 0 : index
    %c0_10 = arith.constant 0 : index
    %14 = vector.load %arg5[%c0_9, %c0_10] : memref<128x128xbf16, #tpu.memory_space<vmem>>, vector<128x128xbf16>
    %cst_11 = arith.constant dense<0.000000e+00> : vector<16x128xf32>
    %15 = tpu.matmul %13, %14, %cst_11 {dimension_numbers = #tpu.dot_dimension_numbers<[1], [0], [0], [1], [0, 0, 1, 1], [], []>} : vector<16x128xbf16>, vector<128x128xbf16>, vector<16x128xf32> -> vector<16x128xf32>
    %16 = arith.addf %12, %15 : vector<16x128xf32>
    %c0_12 = arith.constant 0 : index
    %c0_13 = arith.constant 0 : index
    %17 = vector.load %arg10[%c0_12, %c0_13] : memref<16x128xf32, #tpu.memory_space<vmem>>, vector<16x128xf32>
    tpu.vector_store %arg10[%c0_12, %c0_13], %16 {strides = array<i32>} : memref<16x128xf32, #tpu.memory_space<vmem>>, vector<16x128xf32>,
    %c0_i32_14 = arith.constant 0 : i32
    %18 = arith.cmpi eq, %arg1, %c0_i32_14 : i32
    %19 = arith.extui %18 : i1 to i32
    %c0_i32_15 = arith.constant 0 : i32
    %20 = arith.cmpi ne, %19, %c0_i32_15 : i32
    scf.if %20 {
      %c0_16 = arith.constant 0 : index
      %c0_17 = arith.constant 0 : index
      %21 = vector.load %arg10[%c0_16, %c0_17] : memref<16x128xf32, #tpu.memory_space<vmem>>, vector<16x128xf32>
      %c0_18 = arith.constant 0 : index
      %c0_19 = arith.constant 0 : index
      %22 = vector.load %arg6[%c0_18, %c0_19] : memref<1x128xf32, #tpu.memory_space<vmem>>, vector<1x128xf32>
      %23 = vector.broadcast %22 : vector<1x128xf32> to vector<16x128xf32>
      %24 = arith.addf %21, %23 : vector<16x128xf32>
      %25 = arith.addf %24, %3 : vector<16x128xf32>
      %cst_20 = arith.constant dense<0.000000e+00> : vector<16xf32>
      %26 = vector.multi_reduction <add>, %25, %cst_20 [1] : vector<16x128xf32> to vector<16xf32>
      %27 = vector.shape_cast %26 : vector<16xf32> to vector<16x1xf32>
      %cst_21 = arith.constant 3.125000e-02 : f32
      %28 = vector.broadcast %cst_21 : f32 to vector<16x1xf32>
      %29 = arith.mulf %27, %28 : vector<16x1xf32>
      %30 = vector.broadcast %29 : vector<16x1xf32> to vector<16x128xf32>
      %31 = arith.subf %25, %30 : vector<16x128xf32>
      %32 = tpu.iota {dimensions = array<i32: 1>} : vector<1x128xi32>
      %c32_i32 = arith.constant 32 : i32
      %33 = vector.broadcast %c32_i32 : i32 to vector<1x128xi32>
      %34 = arith.cmpi slt, %32, %33 : vector<1x128xi32>
      %cst_22 = arith.constant 0.000000e+00 : f32
      %35 = vector.shape_cast %34 : vector<1x128xi1> to vector<1x128xi1>
      %36 = vector.broadcast %35 : vector<1x128xi1> to vector<16x128xi1>
      %37 = vector.broadcast %cst_22 : f32 to vector<16x128xf32>
      %38 = arith.select %36, %31, %37 : vector<16x128xi1>, vector<16x128xf32>
      %39 = arith.mulf %38, %38 : vector<16x128xf32>
      %cst_23 = arith.constant dense<0.000000e+00> : vector<16xf32>
      %40 = vector.multi_reduction <add>, %39, %cst_23 [1] : vector<16x128xf32> to vector<16xf32>
      %41 = vector.shape_cast %40 : vector<16xf32> to vector<16x1xf32>
      %cst_24 = arith.constant 3.125000e-02 : f32
      %42 = vector.broadcast %cst_24 : f32 to vector<16x1xf32>
      %43 = arith.mulf %41, %42 : vector<16x1xf32>
      %cst_25 = arith.constant 9.99999997E-7 : f32
      %44 = vector.broadcast %cst_25 : f32 to vector<16x1xf32>
      %45 = arith.addf %43, %44 : vector<16x1xf32>
      %46 = math.rsqrt %45 : vector<16x1xf32>
      %47 = vector.broadcast %46 : vector<16x1xf32> to vector<16x128xf32>
      %48 = arith.mulf %38, %47 : vector<16x128xf32>
      %c0_26 = arith.constant 0 : index
      %c0_27 = arith.constant 0 : index
      %49 = vector.load %arg7[%c0_26, %c0_27] : memref<1x128xf32, #tpu.memory_space<vmem>>, vector<1x128xf32>
      %50 = vector.broadcast %49 : vector<1x128xf32> to vector<16x128xf32>
      %51 = arith.mulf %48, %50 : vector<16x128xf32>
      %c0_28 = arith.constant 0 : index
      %c0_29 = arith.constant 0 : index
      %52 = vector.load %arg8[%c0_28, %c0_29] : memref<1x128xf32, #tpu.memory_space<vmem>>, vector<1x128xf32>
      %53 = vector.broadcast %52 : vector<1x128xf32> to vector<16x128xf32>
      %54 = arith.addf %51, %53 : vector<16x128xf32>
      %c0_30 = arith.constant 0 : index
      %c0_31 = arith.constant 0 : index
      %55 = vector.load %arg9[%c0_30, %c0_31] : memref<16x128xf32, #tpu.memory_space<vmem>>, vector<16x128xf32>
      tpu.vector_store %arg9[%c0_30, %c0_31], %54 {strides = array<i32>} : memref<16x128xf32, #tpu.memory_space<vmem>>, vector<16x128xf32>,
    } else {
    }
    return
  }
  func.func @transform_0(%arg0: i32, %arg1: i32) -> (i32, i32) {
    %c0_i32 = arith.constant 0 : i32
    %c0_i32_0 = arith.constant 0 : i32
    return %arg0, %c0_i32 : i32, i32
  }
  func.func @transform_1(%arg0: i32, %arg1: i32) -> (i32, i32) {
    %c0_i32 = arith.constant 0 : i32
    %c0_i32_0 = arith.constant 0 : i32
    return %c0_i32, %arg1 : i32, i32
  }
  func.func @transform_2(%arg0: i32, %arg1: i32) -> (i32, i32) {
    %c0_i32 = arith.constant 0 : i32
    %c0_i32_0 = arith.constant 0 : i32
    return %c0_i32, %arg1 : i32, i32
  }
  func.func @transform_3(%arg0: i32, %arg1: i32) -> (i32, i32) {
    %c0_i32 = arith.constant 0 : i32
    %c0_i32_0 = arith.constant 0 : i32
    return %arg1, %c0_i32 : i32, i32
  }
  func.func @transform_4(%arg0: i32, %arg1: i32) -> (i32, i32) {
    %c0_i32 = arith.constant 0 : i32
    %c0_i32_0 = arith.constant 0 : i32
    %c0_i32_1 = arith.constant 0 : i32
    return %c0_i32, %c0_i32_0 : i32, i32
  }
  func.func @transform_5(%arg0: i32, %arg1: i32) -> (i32, i32) {
    %c0_i32 = arith.constant 0 : i32
    %c0_i32_0 = arith.constant 0 : i32
    %c0_i32_1 = arith.constant 0 : i32
    return %c0_i32, %c0_i32_0 : i32, i32
  }
  func.func @transform_6(%arg0: i32, %arg1: i32) -> (i32, i32) {
    %c0_i32 = arith.constant 0 : i32
    %c0_i32_0 = arith.constant 0 : i32
    %c0_i32_1 = arith.constant 0 : i32
    return %c0_i32, %c0_i32_0 : i32, i32
  }
  func.func @transform_7(%arg0: i32, %arg1: i32) -> (i32, i32) {
    %c0_i32 = arith.constant 0 : i32
    %c0_i32_0 = arith.constant 0 : i32
    return %arg0, %c0_i32 : i32, i32
  }
}

</mosaic_0001>

<llo_original>
// kernel: tpu_custom_call.1
$region0: #{tpu_custom_call.1}
  #allocation0 [shape = 'u32[]', space=smem, size = 0x4, offset = 0x4, fixed_abs, tag = 'smem constant byte address 0x4 - core index']
  #allocation1 [shape = 'u32[144,128]{1,0:T(1,128)}', space=vmem, size = 0x12000, scoped, tag = 'internal scratch']
  #allocation2 [shape = 'f32[16,128]{1,0:T(8,128)}', space=vmem, size = 0x2000, scoped, tag = 'scratch operand']
  %s0 = inlined_call_operand.hbm [shape: f32[16,128], index: 0, kind: input, shape index: {}]
  %s1 = inlined_call_operand.hbm [shape: bf16[128,128], index: 1, kind: input, shape index: {}]
  %s2 = inlined_call_operand.vmem [shape: f32[1,128], index: 2, kind: input, shape index: {}]
  %s3 = inlined_call_operand.hbm [shape: bf16[128,128], index: 3, kind: input, shape index: {}]
  %s4 = inlined_call_operand.vmem [shape: f32[1,128], index: 4, kind: input, shape index: {}]
  %s5 = inlined_call_operand.vmem [shape: f32[1,128], index: 5, kind: input, shape index: {}]
  %s6 = inlined_call_operand.vmem [shape: f32[1,128], index: 6, kind: input, shape index: {}]
  %s7 = inlined_call_operand.hbm [shape: f32[16,128], index: 7, kind: output, shape index: {}]
  %s8 = sld [smem:[#allocation0]]
  $region58: #{tpu_custom_call.1} parent=0
    _
  %s10 = ssub.s32 1, %s8
  %s11 = scalar_select 0, %s10, %s8
  $region1: #{tpu_custom_call.1} parent=0
    #allocation3 [shape = 'u8[8192]{0}', space=vmem, size = 0x2000, scoped, tag = 'input window, operand 0, single buffered']
    #allocation4 [shape = 's32[1]{0}', space=sflag, size = 0x4, scoped, tag = 'scoped memory for tpu_custom_call.1']
    #allocation5 [shape = 's32[1]{0}', space=sflag, size = 0x4, scoped, tag = 'scoped memory for tpu_custom_call.1']
    #allocation6 [shape = 'u8[32768]{0}', space=vmem, size = 0x8000, scoped, tag = 'input window, operand 1, single buffered']
    #allocation7 [shape = 's32[1]{0}', space=sflag, size = 0x4, scoped, tag = 'scoped memory for tpu_custom_call.1']
    #allocation8 [shape = 'u8[32768]{0}', space=vmem, size = 0x8000, scoped, tag = 'input window, operand 3, single buffered']
    #allocation9 [shape = 'u8[8192]{0}', space=vmem, size = 0x2000, scoped, tag = 'output window, operand 0, single buffered']
    %12 = vsyncpa [#allocation4], 0
    %13 = vsyncpa [#allocation7], 0
    %14 = vsyncpa [#allocation5], 0
    // Predicated region
    $region2: #{tpu_custom_call.1} parent=1 // pred_check
      _
    $region3: #{tpu_custom_call.1} parent=1 // pred_check_branch
      %16 = sbr.rel (0) target = $region5
    $region4: #{tpu_custom_call.1} parent=1 // pred_region
      %s18 = ssub.s32 256, 256
      %19 = vsyncadd [#allocation4], %s18
      %s20 = sshll.u32 [#allocation3], 4
      %s21 = int_to_ptr.vmem [resolvable:$true] %s20
      %26 = dma.hbm_to_vmem [thread:$0]  %s0, 256, %s21, [#allocation4], 128, 128, 8
    $region5: #{tpu_custom_call.1} parent=1 // pred_fallthru
      _
    // Predicated region
    $region6: #{tpu_custom_call.1} parent=1 // pred_check
      _
    $region7: #{tpu_custom_call.1} parent=1 // pred_check_branch
      %28 = sbr.rel (0) target = $region9
    $region8: #{tpu_custom_call.1} parent=1 // pred_region
      %s30 = ssub.s32 1024, 1024
      %31 = vsyncadd [#allocation7], %s30
      %s32 = sshll.u32 [#allocation6], 4
      %s33 = int_to_ptr.vmem [resolvable:$true] %s32
      %38 = dma.hbm_to_vmem [thread:$0]  %s1, 1024, %s33, [#allocation7], 64, 64, 4
    $region9: #{tpu_custom_call.1} parent=1 // pred_fallthru
      _
    // Predicated region
    $region10: #{tpu_custom_call.1} parent=1 // pred_check
      _
    $region11: #{tpu_custom_call.1} parent=1 // pred_check_branch
      %40 = sbr.rel (0) target = $region13
    $region12: #{tpu_custom_call.1} parent=1 // pred_region
      _
    $region13: #{tpu_custom_call.1} parent=1 // pred_fallthru
      _
    // Predicated region
    $region14: #{tpu_custom_call.1} parent=1 // pred_check
      _
    $region15: #{tpu_custom_call.1} parent=1 // pred_check_branch
      %42 = sbr.rel (0) target = $region17
    $region16: #{tpu_custom_call.1} parent=1 // pred_region
      %s44 = ssub.s32 1024, 1024
      %45 = vsyncadd [#allocation7], %s44
      %s46 = sshll.u32 [#allocation8], 4
      %s47 = int_to_ptr.vmem [resolvable:$true] %s46
      %52 = dma.hbm_to_vmem [thread:$0]  %s3, 1024, %s47, [#allocation7], 64, 64, 4
    $region17: #{tpu_custom_call.1} parent=1 // pred_fallthru
      _
    // Predicated region
    $region18: #{tpu_custom_call.1} parent=1 // pred_check
      _
    $region19: #{tpu_custom_call.1} parent=1 // pred_check_branch
      %54 = sbr.rel (0) target = $region21
    $region20: #{tpu_custom_call.1} parent=1 // pred_region
      _
    $region21: #{tpu_custom_call.1} parent=1 // pred_fallthru
      _
    // Predicated region
    $region22: #{tpu_custom_call.1} parent=1 // pred_check
      _
    $region23: #{tpu_custom_call.1} parent=1 // pred_check_branch
      %56 = sbr.rel (0) target = $region25
    $region24: #{tpu_custom_call.1} parent=1 // pred_region
      _
    $region25: #{tpu_custom_call.1} parent=1 // pred_fallthru
      _
    // Predicated region
    $region26: #{tpu_custom_call.1} parent=1 // pred_check
      _
    $region27: #{tpu_custom_call.1} parent=1 // pred_check_branch
      %58 = sbr.rel (0) target = $region29
    $region28: #{tpu_custom_call.1} parent=1 // pred_region
      _
    $region29: #{tpu_custom_call.1} parent=1 // pred_fallthru
      _
    // Predicated region
    $region30: #{tpu_custom_call.1} parent=1 // pred_check
      _
    $region31: #{tpu_custom_call.1} parent=1 // pred_check_branch
      %60 = sbr.rel (0) target = $region33
    $region32: #{tpu_custom_call.1} parent=1 // pred_region
      %61 = dma.done [#allocation4], 256
    $region33: #{tpu_custom_call.1} parent=1 // pred_fallthru
      _
    // Predicated region
    $region34: #{tpu_custom_call.1} parent=1 // pred_check
      _
    $region35: #{tpu_custom_call.1} parent=1 // pred_check_branch
      %63 = sbr.rel (0) target = $region37
    $region36: #{tpu_custom_call.1} parent=1 // pred_region
      %64 = dma.done [#allocation7], 1024
    $region37: #{tpu_custom_call.1} parent=1 // pred_fallthru
      _
    // Predicated region
    $region38: #{tpu_custom_call.1} parent=1 // pred_check
      _
    $region39: #{tpu_custom_call.1} parent=1 // pred_check_branch
      %66 = sbr.rel (0) target = $region41
    $region40: #{tpu_custom_call.1} parent=1 // pred_region
      %67 = dma.done [#allocation7], 1024
    $region41: #{tpu_custom_call.1} parent=1 // pred_fallthru
      _
    %p69 = scmp.eq.s32.totalorder 0, 0
    // Predicated region
    $region42: #{tpu_custom_call.1} parent=1 // pred_check
      %p70 = pneg %p69
    $region43: #{tpu_custom_call.1} parent=1 // pred_check_branch
      %72 = sbr.rel (%p70) target = $region45
    $region44: #{tpu_custom_call.1} parent=1 // pred_region
      %73 = vst [vmem:[#allocation2] sm:$0xff] 0.0
      %74 = vst [vmem:[#allocation2 + $0x8] sm:$0xff] 0.0
    $region45: #{tpu_custom_call.1} parent=1 // pred_fallthru
      _
    %v75 = vld [vmem:[#allocation3] sm:$0xff]
    %v76 = vld [vmem:[#allocation3 + $0x8] sm:$0xff]
    %v77 = vpack.c.bf16 %v76, %v75
    %v78 = vld [vmem:[#allocation6] sm:$0xf]
    %v79 = vld [vmem:[#allocation6 + $0x4] sm:$0xf]
    %v80 = vld [vmem:[#allocation6 + $0x8] sm:$0xf]
    %v81 = vld [vmem:[#allocation6 + $0xc] sm:$0xf]
    %v82 = vld [vmem:[#allocation6 + $0x10] sm:$0xf]
    %v83 = vld [vmem:[#allocation6 + $0x14] sm:$0xf]
    %v84 = vld [vmem:[#allocation6 + $0x18] sm:$0xf]
    %v85 = vld [vmem:[#allocation6 + $0x1c] sm:$0xf]
    %v86 = vld [vmem:[#allocation6 + $0x20] sm:$0xf]
    %v87 = vld [vmem:[#allocation6 + $0x24] sm:$0xf]
    %v88 = vld [vmem:[#allocation6 + $0x28] sm:$0xf]
    %v89 = vld [vmem:[#allocation6 + $0x2c] sm:$0xf]
    %v90 = vld [vmem:[#allocation6 + $0x30] sm:$0xf]
    %v91 = vld [vmem:[#allocation6 + $0x34] sm:$0xf]
    %v92 = vld [vmem:[#allocation6 + $0x38] sm:$0xf]
    %v93 = vld [vmem:[#allocation6 + $0x3c] sm:$0xf]
    %v94 = vld [vmem:[%s2] sm:$0x1]
    %v96 = vlaneseq
    %v97 = vshrl.u32 %v96, 7
    %v98 = vsub.s32 0, %v97
    %v99 = vrot.slane %v94, %v98
    %v117 = vunpack.c.l.b16 %v78
    %v118 = vunpack.c.l.b16 %v79
    %v119 = vunpack.c.l.b16 %v80
    %v120 = vunpack.c.l.b16 %v81
    %v121 = vunpack.c.l.b16 %v82
    %v122 = vunpack.c.l.b16 %v83
    %v123 = vunpack.c.l.b16 %v84
    %v124 = vunpack.c.l.b16 %v85
    %v125 = vunpack.c.l.b16 %v86
    %v126 = vunpack.c.l.b16 %v87
    %v127 = vunpack.c.l.b16 %v88
    %v128 = vunpack.c.l.b16 %v89
    %v129 = vunpack.c.l.b16 %v90
    %v130 = vunpack.c.l.b16 %v91
    %v131 = vunpack.c.l.b16 %v92
    %v132 = vunpack.c.l.b16 %v93
    %v133 = vpack.c.b16 %v118, %v117
    %v134 = vpack.c.b16 %v120, %v119
    %v135 = vpack.c.b16 %v122, %v121
    %v136 = vpack.c.b16 %v124, %v123
    %v137 = vpack.c.b16 %v126, %v125
    %v138 = vpack.c.b16 %v128, %v127
    %v139 = vpack.c.b16 %v130, %v129
    %v140 = vpack.c.b16 %v132, %v131
    %149 = vmatprep.subr.bf16.mxu0 0
    %150 = vmatpush1.bf16.msra.mxu0 %v133
    %151 = vmatprep.subr.bf16.mxu0 0
    %152 = vmatpush1.bf16.msra.mxu0 %v134
    %153 = vmatprep.subr.bf16.mxu0 0
    %154 = vmatpush1.bf16.msra.mxu0 %v135
    %155 = vmatprep.subr.bf16.mxu0 0
    %156 = vmatpush1.bf16.msra.mxu0 %v136
    %157 = vmatprep.subr.bf16.mxu0 0
    %158 = vmatpush1.bf16.msra.mxu0 %v137
    %159 = vmatprep.subr.bf16.mxu0 0
    %160 = vmatpush1.bf16.msra.mxu0 %v138
    %161 = vmatprep.subr.bf16.mxu0 0
    %162 = vmatpush1.bf16.msra.mxu0 %v139
    %163 = vmatprep.subr.bf16.mxu0 0
    %164 = vmatpush1.bf16.msra.mxu0 %v140
    %165 = vmatprep.subr.bf16.mxu0 0
    %166 = vmatpush1.bf16.msra.mxu0 0
    %167 = vmatprep.subr.bf16.mxu0 0
    %168 = vmatpush1.bf16.msra.mxu0 0
    %169 = vmatprep.subr.bf16.mxu0 0
    %170 = vmatpush1.bf16.msra.mxu0 0
    %171 = vmatprep.subr.bf16.mxu0 0
    %172 = vmatpush1.bf16.msra.mxu0 0
    %173 = vmatprep.subr.bf16.mxu0 0
    %174 = vmatpush1.bf16.msra.mxu0 0
    %175 = vmatprep.subr.bf16.mxu0 0
    %176 = vmatpush1.bf16.msra.mxu0 0
    %177 = vmatprep.subr.bf16.mxu0 0
    %178 = vmatpush1.bf16.msra.mxu0 0
    %179 = vmatprep.subr.bf16.mxu0 0
    %180 = vmatpush1.bf16.msra.mxu0 0
    %181 = vmatprep.mubr.bf16.mxu0 0
    %182 = vmatmul.mubr.bf16.gmra.mrb[0].mxu0 %v77
    %v183 = vpop.f32.mrb[0].mxu0
    %v184 = vadd.f32 %v99, %v183
    %v185 = vpop.f32.mrb[0].mxu0
    %v186 = vpop.f32.mrb[0].mxu0
    %v187 = vadd.f32 %v99, %v186
    %v188 = vpop.f32.mrb[0].mxu0
    %189 = vdwg.mxu0
    %v190 = vmax.f32 %v184, 0.0
    %v191 = vmax.f32 %v187, 0.0
    %v192 = vld [vmem:[#allocation2] sm:$0xff]
    %v193 = vld [vmem:[#allocation2 + $0x8] sm:$0xff]
    %v194 = vpack.c.bf16 %v191, %v190
    %v195 = vld [vmem:[#allocation8] sm:$0xf]
    %v196 = vld [vmem:[#allocation8 + $0x4] sm:$0xf]
    %v197 = vld [vmem:[#allocation8 + $0x8] sm:$0xf]
    %v198 = vld [vmem:[#allocation8 + $0xc] sm:$0xf]
    %v199 = vld [vmem:[#allocation8 + $0x10] sm:$0xf]
    %v200 = vld [vmem:[#allocation8 + $0x14] sm:$0xf]
    %v201 = vld [vmem:[#allocation8 + $0x18] sm:$0xf]
    %v202 = vld [vmem:[#allocation8 + $0x1c] sm:$0xf]
    %v203 = vld [vmem:[#allocation8 + $0x20] sm:$0xf]
    %v204 = vld [vmem:[#allocation8 + $0x24] sm:$0xf]
    %v205 = vld [vmem:[#allocation8 + $0x28] sm:$0xf]
    %v206 = vld [vmem:[#allocation8 + $0x2c] sm:$0xf]
    %v207 = vld [vmem:[#allocation8 + $0x30] sm:$0xf]
    %v208 = vld [vmem:[#allocation8 + $0x34] sm:$0xf]
    %v209 = vld [vmem:[#allocation8 + $0x38] sm:$0xf]
    %v210 = vld [vmem:[#allocation8 + $0x3c] sm:$0xf]
    %v227 = vunpack.c.l.b16 %v195
    %v228 = vunpack.c.l.b16 %v196
    %v229 = vunpack.c.l.b16 %v197
    %v230 = vunpack.c.l.b16 %v198
    %v231 = vunpack.c.l.b16 %v199
    %v232 = vunpack.c.l.b16 %v200
    %v233 = vunpack.c.l.b16 %v201
    %v234 = vunpack.c.l.b16 %v202
    %v235 = vunpack.c.l.b16 %v203
    %v236 = vunpack.c.l.b16 %v204
    %v237 = vunpack.c.l.b16 %v205
    %v238 = vunpack.c.l.b16 %v206
    %v239 = vunpack.c.l.b16 %v207
    %v240 = vunpack.c.l.b16 %v208
    %v241 = vunpack.c.l.b16 %v209
    %v242 = vunpack.c.l.b16 %v210
    %v243 = vpack.c.b16 %v228, %v227
    %v244 = vpack.c.b16 %v230, %v229
    %v245 = vpack.c.b16 %v232, %v231
    %v246 = vpack.c.b16 %v234, %v233
    %v247 = vpack.c.b16 %v236, %v235
    %v248 = vpack.c.b16 %v238, %v237
    %v249 = vpack.c.b16 %v240, %v239
    %v250 = vpack.c.b16 %v242, %v241
    %259 = vmatprep.subr.bf16.mxu0 0
    %260 = vmatpush1.bf16.msra.mxu0 %v243
    %261 = vmatprep.subr.bf16.mxu0 0
    %262 = vmatpush1.bf16.msra.mxu0 %v244
    %263 = vmatprep.subr.bf16.mxu0 0
    %264 = vmatpush1.bf16.msra.mxu0 %v245
    %265 = vmatprep.subr.bf16.mxu0 0
    %266 = vmatpush1.bf16.msra.mxu0 %v246
    %267 = vmatprep.subr.bf16.mxu0 0
    %268 = vmatpush1.bf16.msra.mxu0 %v247
    %269 = vmatprep.subr.bf16.mxu0 0
    %270 = vmatpush1.bf16.msra.mxu0 %v248
    %271 = vmatprep.subr.bf16.mxu0 0
    %272 = vmatpush1.bf16.msra.mxu0 %v249
    %273 = vmatprep.subr.bf16.mxu0 0
    %274 = vmatpush1.bf16.msra.mxu0 %v250
    %275 = vmatprep.subr.bf16.mxu0 0
    %276 = vmatpush1.bf16.msra.mxu0 0
    %277 = vmatprep.subr.bf16.mxu0 0
    %278 = vmatpush1.bf16.msra.mxu0 0
    %279 = vmatprep.subr.bf16.mxu0 0
    %280 = vmatpush1.bf16.msra.mxu0 0
    %281 = vmatprep.subr.bf16.mxu0 0
    %282 = vmatpush1.bf16.msra.mxu0 0
    %283 = vmatprep.subr.bf16.mxu0 0
    %284 = vmatpush1.bf16.msra.mxu0 0
    %285 = vmatprep.subr.bf16.mxu0 0
    %286 = vmatpush1.bf16.msra.mxu0 0
    %287 = vmatprep.subr.bf16.mxu0 0
    %288 = vmatpush1.bf16.msra.mxu0 0
    %289 = vmatprep.subr.bf16.mxu0 0
    %290 = vmatpush1.bf16.msra.mxu0 0
    %291 = vmatprep.mubr.bf16.mxu0 0
    %292 = vmatmul.mubr.bf16.gmra.mrb[0].mxu0 %v194
    %v293 = vpop.f32.mrb[0].mxu0
    %v294 = vadd.f32 0.0, %v293
    %v295 = vpop.f32.mrb[0].mxu0
    %v296 = vpop.f32.mrb[0].mxu0
    %v297 = vadd.f32 0.0, %v296
    %v298 = vpop.f32.mrb[0].mxu0
    %299 = vdwg.mxu0
    %v300 = vadd.f32 %v192, %v294
    %v301 = vadd.f32 %v193, %v297
    %302 = vst [vmem:[#allocation2] sm:$0xff] %v300
    %303 = vst [vmem:[#allocation2 + $0x8] sm:$0xff] %v301
    // Predicated region
    $region46: #{tpu_custom_call.1} parent=1 // pred_check
      %p304 = pneg %p69
    $region47: #{tpu_custom_call.1} parent=1 // pred_check_branch
      %306 = sbr.rel (%p304) target = $region49
    $region48: #{tpu_custom_call.1} parent=1 // pred_region
      %v307 = vld [vmem:[#allocation2] sm:$0xff]
      %v308 = vld [vmem:[#allocation2 + $0x8] sm:$0xff]
      %v309 = vld [vmem:[%s4] sm:$0x1]
      %v311 = vlaneseq
      %v312 = vshrl.u32 %v311, 7
      %v313 = vsub.s32 0, %v312
      %v314 = vrot.slane %v309, %v313
      %v316 = vadd.f32 %v307, %v314
      %v317 = vadd.f32 %v308, %v314
      %v318 = vadd.f32 %v316, %v75
      %v319 = vadd.f32 %v317, %v76
      %320 = vadd.xlane.f32.xlu0 %v318
      %v321 = vpop.xlane.xlu0 %320
      %322 = vadd.xlane.f32.xlu0 %v319
      %v323 = vpop.xlane.xlu0 %322
      %v324 = vmul.f32 %v321, 0.03125
      %v325 = vmul.f32 %v323, 0.03125
      %v326 = vsub.f32 %v318, %v324
      %v327 = vsub.f32 %v319, %v325
      %v328 = vlaneseq
      %v329 = vand.u32 %v328, 127
      %vm330 = vcmp.lt.s32.totalorder %v329, 32
      %v331 = vsel %vm330, 1, 0
      %vm332 = vcmp.eq.s32.totalorder %v331, 1
      %v333 = vsel %vm332, %v326, 0.0
      %v334 = vsel %vm332, %v327, 0.0
      %v335 = vmul.f32 %v333, %v333
      %v336 = vmul.f32 %v334, %v334
      %337 = vadd.xlane.f32.xlu0 %v335
      %v338 = vpop.xlane.xlu0 %337
      %339 = vadd.xlane.f32.xlu0 %v336
      %v340 = vpop.xlane.xlu0 %339
      %v341 = vmul.f32 %v338, 0.03125
      %v342 = vmul.f32 %v340, 0.03125
      %v343 = vadd.f32 %v341, 1e-06
      %v344 = vadd.f32 %v342, 1e-06
      %v345 = vrsqrt.pop %v343
      %v346 = vrsqrt.pop %v344
      %v347 = vmul.f32 %v333, %v345
      %v348 = vmul.f32 %v334, %v346
      %v349 = vld [vmem:[%s5] sm:$0x1]
      %v351 = vlaneseq
      %v352 = vshrl.u32 %v351, 7
      %v353 = vsub.s32 0, %v352
      %v354 = vrot.slane %v349, %v353
      %v356 = vmul.f32 %v347, %v354
      %v357 = vmul.f32 %v348, %v354
      %v358 = vld [vmem:[%s6] sm:$0x1]
      %v360 = vlaneseq
      %v361 = vshrl.u32 %v360, 7
      %v362 = vsub.s32 0, %v361
      %v363 = vrot.slane %v358, %v362
      %v365 = vadd.f32 %v356, %v363
      %v366 = vadd.f32 %v357, %v363
      %367 = vst [vmem:[#allocation9] sm:$0xff] %v365
      %368 = vst [vmem:[#allocation9 + $0x8] sm:$0xff] %v366
    $region49: #{tpu_custom_call.1} parent=1 // pred_fallthru
      _
    // Predicated region
    $region50: #{tpu_custom_call.1} parent=1 // pred_check
      _
    $region51: #{tpu_custom_call.1} parent=1 // pred_check_branch
      %370 = sbr.rel (0) target = $region53
    $region52: #{tpu_custom_call.1} parent=1 // pred_region
      %s372 = ssub.s32 256, 256
      %373 = vsyncadd [#allocation5], %s372
      %s374 = sshll.u32 [#allocation9], 4
      %s375 = int_to_ptr.vmem [resolvable:$true] %s374
      %380 = dma.vmem_to_hbm [thread:$0]  %s375, 256, %s7, [#allocation5], 128, 128, 8
    $region53: #{tpu_custom_call.1} parent=1 // pred_fallthru
      _
    // Predicated region
    $region54: #{tpu_custom_call.1} parent=1 // pred_check
      _
    $region55: #{tpu_custom_call.1} parent=1 // pred_check_branch
      %382 = sbr.rel (0) target = $region57
    $region56: #{tpu_custom_call.1} parent=1 // pred_region
      %383 = dma.done [#allocation5], 256
    $region57: #{tpu_custom_call.1} parent=1 // pred_fallthru
      _
    %384 = vsyncpa [#allocation4], 1
    %385 = vsyncpa [#allocation7], 1
    %386 = vsyncpa [#allocation5], 1

// kernel: tpu_custom_call.1
$region0: #{tpu_custom_call.1}
  #allocation0 [shape = 'u32[]', space=smem, size = 0x4, offset = 0x4, fixed_abs, tag = 'smem constant byte address 0x4 - core index']
  #allocation1 [shape = 'u32[144,128]{1,0:T(1,128)}', space=vmem, size = 0x12000, scoped, tag = 'internal scratch']
  #allocation2 [shape = 'f32[16,128]{1,0:T(8,128)}', space=vmem, size = 0x2000, scoped, tag = 'scratch operand']
  %s0 = inlined_call_operand.hbm [shape: f32[16,128], index: 0, kind: input, shape index: {}]
  %s1 = inlined_call_operand.hbm [shape: bf16[128,128], index: 1, kind: input, shape index: {}]
  %s2 = inlined_call_operand.vmem [shape: f32[1,128], index: 2, kind: input, shape index: {}]
  %s3 = inlined_call_operand.hbm [shape: bf16[128,128], index: 3, kind: input, shape index: {}]
  %s4 = inlined_call_operand.vmem [shape: f32[1,128], index: 4, kind: input, shape index: {}]
  %s5 = inlined_call_operand.vmem [shape: f32[1,128], index: 5, kind: input, shape index: {}]
  %s6 = inlined_call_operand.vmem [shape: f32[1,128], index: 6, kind: input, shape index: {}]
  %s7 = inlined_call_operand.hbm [shape: f32[16,128], index: 7, kind: output, shape index: {}]
  %s8 = sld [smem:[#allocation0]]
  $region58: #{tpu_custom_call.1} parent=0
    _
  %s10 = ssub.s32 1, %s8
  %s11 = scalar_select 0, %s10, %s8
  $region1: #{tpu_custom_call.1} parent=0
    #allocation3 [shape = 'u8[8192]{0}', space=vmem, size = 0x2000, scoped, tag = 'input window, operand 0, single buffered']
    #allocation4 [shape = 's32[1]{0}', space=sflag, size = 0x4, scoped, tag = 'scoped memory for tpu_custom_call.1']
    #allocation5 [shape = 's32[1]{0}', space=sflag, size = 0x4, scoped, tag = 'scoped memory for tpu_custom_call.1']
    #allocation6 [shape = 'u8[32768]{0}', space=vmem, size = 0x8000, scoped, tag = 'input window, operand 1, single buffered']
    #allocation7 [shape = 's32[1]{0}', space=sflag, size = 0x4, scoped, tag = 'scoped memory for tpu_custom_call.1']
    #allocation8 [shape = 'u8[32768]{0}', space=vmem, size = 0x8000, scoped, tag = 'input window, operand 3, single buffered']
    #allocation9 [shape = 'u8[8192]{0}', space=vmem, size = 0x2000, scoped, tag = 'output window, operand 0, single buffered']
    %12 = vsyncpa [#allocation4], 0
    %13 = vsyncpa [#allocation7], 0
    %14 = vsyncpa [#allocation5], 0
    // Predicated region
    $region2: #{tpu_custom_call.1} parent=1 // pred_check
      _
    $region3: #{tpu_custom_call.1} parent=1 // pred_check_branch
      %16 = sbr.rel (0) target = $region5
    $region4: #{tpu_custom_call.1} parent=1 // pred_region
      %s18 = ssub.s32 256, 256
      %19 = vsyncadd [#allocation4], %s18
      %s20 = sshll.u32 [#allocation3], 4
      %s21 = int_to_ptr.vmem [resolvable:$true] %s20
      %26 = dma.hbm_to_vmem [thread:$0]  %s0, 256, %s21, [#allocation4], 128, 128, 8
    $region5: #{tpu_custom_call.1} parent=1 // pred_fallthru
      _
    // Predicated region
    $region6: #{tpu_custom_call.1} parent=1 // pred_check
      _
    $region7: #{tpu_custom_call.1} parent=1 // pred_check_branch
      %28 = sbr.rel (0) target = $region9
    $region8: #{tpu_custom_call.1} parent=1 // pred_region
      %s30 = ssub.s32 1024, 1024
      %31 = vsyncadd [#allocation7], %s30
      %s32 = sshll.u32 [#allocation6], 4
      %s33 = int_to_ptr.vmem [resolvable:$true] %s32
      %38 = dma.hbm_to_vmem [thread:$0]  %s1, 1024, %s33, [#allocation7], 64, 64, 4
    $region9: #{tpu_custom_call.1} parent=1 // pred_fallthru
      _
    // Predicated region
    $region10: #{tpu_custom_call.1} parent=1 // pred_check
      _
    $region11: #{tpu_custom_call.1} parent=1 // pred_check_branch
      %40 = sbr.rel (0) target = $region13
    $region12: #{tpu_custom_call.1} parent=1 // pred_region
      _
    $region13: #{tpu_custom_call.1} parent=1 // pred_fallthru
      _
    // Predicated region
    $region14: #{tpu_custom_call.1} parent=1 // pred_check
      _
    $region15: #{tpu_custom_call.1} parent=1 // pred_check_branch
      %42 = sbr.rel (0) target = $region17
    $region16: #{tpu_custom_call.1} parent=1 // pred_region
      %s44 = ssub.s32 1024, 1024
      %45 = vsyncadd [#allocation7], %s44
      %s46 = sshll.u32 [#allocation8], 4
      %s47 = int_to_ptr.vmem [resolvable:$true] %s46
      %52 = dma.hbm_to_vmem [thread:$0]  %s3, 1024, %s47, [#allocation7], 64, 64, 4
    $region17: #{tpu_custom_call.1} parent=1 // pred_fallthru
      _
    // Predicated region
    $region18: #{tpu_custom_call.1} parent=1 // pred_check
      _
    $region19: #{tpu_custom_call.1} parent=1 // pred_check_branch
      %54 = sbr.rel (0) target = $region21
    $region20: #{tpu_custom_call.1} parent=1 // pred_region
      _
    $region21: #{tpu_custom_call.1} parent=1 // pred_fallthru
      _
    // Predicated region
    $region22: #{tpu_custom_call.1} parent=1 // pred_check
      _
    $region23: #{tpu_custom_call.1} parent=1 // pred_check_branch
      %56 = sbr.rel (0) target = $region25
    $region24: #{tpu_custom_call.1} parent=1 // pred_region
      _
    $region25: #{tpu_custom_call.1} parent=1 // pred_fallthru
      _
    // Predicated region
    $region26: #{tpu_custom_call.1} parent=1 // pred_check
      _
    $region27: #{tpu_custom_call.1} parent=1 // pred_check_branch
      %58 = sbr.rel (0) target = $region29
    $region28: #{tpu_custom_call.1} parent=1 // pred_region
      _
    $region29: #{tpu_custom_call.1} parent=1 // pred_fallthru
      _
    // Predicated region
    $region30: #{tpu_custom_call.1} parent=1 // pred_check
      _
    $region31: #{tpu_custom_call.1} parent=1 // pred_check_branch
      %60 = sbr.rel (0) target = $region33
    $region32: #{tpu_custom_call.1} parent=1 // pred_region
      %61 = dma.done [#allocation4], 256
    $region33: #{tpu_custom_call.1} parent=1 // pred_fallthru
      _
    // Predicated region
    $region34: #{tpu_custom_call.1} parent=1 // pred_check
      _
    $region35: #{tpu_custom_call.1} parent=1 // pred_check_branch
      %63 = sbr.rel (0) target = $region37
    $region36: #{tpu_custom_call.1} parent=1 // pred_region
      %64 = dma.done [#allocation7], 1024
    $region37: #{tpu_custom_call.1} parent=1 // pred_fallthru
      _
    // Predicated region
    $region38: #{tpu_custom_call.1} parent=1 // pred_check
      _
    $region39: #{tpu_custom_call.1} parent=1 // pred_check_branch
      %66 = sbr.rel (0) target = $region41
    $region40: #{tpu_custom_call.1} parent=1 // pred_region
      %67 = dma.done [#allocation7], 1024
    $region41: #{tpu_custom_call.1} parent=1 // pred_fallthru
      _
    %p69 = scmp.eq.s32.totalorder 0, 0
    // Predicated region
    $region42: #{tpu_custom_call.1} parent=1 // pred_check
      %p70 = pneg %p69
    $region43: #{tpu_custom_call.1} parent=1 // pred_check_branch
      %72 = sbr.rel (%p70) target = $region45
    $region44: #{tpu_custom_call.1} parent=1 // pred_region
      %73 = vst [vmem:[#allocation2] sm:$0xff] 0.0
      %74 = vst [vmem:[#allocation2 + $0x8] sm:$0xff] 0.0
    $region45: #{tpu_custom_call.1} parent=1 // pred_fallthru
      _
    %v75 = vld [vmem:[#allocation3] sm:$0xff]
    %v76 = vld [vmem:[#allocation3 + $0x8] sm:$0xff]
    %v77 = vpack.c.bf16 %v76, %v75
    %v78 = vld [vmem:[#allocation6] sm:$0xf]
    %v79 = vld [vmem:[#allocation6 + $0x4] sm:$0xf]
    %v80 = vld [vmem:[#allocation6 + $0x8] sm:$0xf]
    %v81 = vld [vmem:[#allocation6 + $0xc] sm:$0xf]
    %v82 = vld [vmem:[#allocation6 + $0x10] sm:$0xf]
    %v83 = vld [vmem:[#allocation6 + $0x14] sm:$0xf]
    %v84 = vld [vmem:[#allocation6 + $0x18] sm:$0xf]
    %v85 = vld [vmem:[#allocation6 + $0x1c] sm:$0xf]
    %v86 = vld [vmem:[#allocation6 + $0x20] sm:$0xf]
    %v87 = vld [vmem:[#allocation6 + $0x24] sm:$0xf]
    %v88 = vld [vmem:[#allocation6 + $0x28] sm:$0xf]
    %v89 = vld [vmem:[#allocation6 + $0x2c] sm:$0xf]
    %v90 = vld [vmem:[#allocation6 + $0x30] sm:$0xf]
    %v91 = vld [vmem:[#allocation6 + $0x34] sm:$0xf]
    %v92 = vld [vmem:[#allocation6 + $0x38] sm:$0xf]
    %v93 = vld [vmem:[#allocation6 + $0x3c] sm:$0xf]
    %v94 = vld [vmem:[%s2] sm:$0x1]
    %v96 = vlaneseq
    %v97 = vshrl.u32 %v96, 7
    %v98 = vsub.s32 0, %v97
    %v99 = vrot.slane %v94, %v98
    %v117 = vunpack.c.l.b16 %v78
    %v118 = vunpack.c.l.b16 %v79
    %v119 = vunpack.c.l.b16 %v80
    %v120 = vunpack.c.l.b16 %v81
    %v121 = vunpack.c.l.b16 %v82
    %v122 = vunpack.c.l.b16 %v83
    %v123 = vunpack.c.l.b16 %v84
    %v124 = vunpack.c.l.b16 %v85
    %v125 = vunpack.c.l.b16 %v86
    %v126 = vunpack.c.l.b16 %v87
    %v127 = vunpack.c.l.b16 %v88
    %v128 = vunpack.c.l.b16 %v89
    %v129 = vunpack.c.l.b16 %v90
    %v130 = vunpack.c.l.b16 %v91
    %v131 = vunpack.c.l.b16 %v92
    %v132 = vunpack.c.l.b16 %v93
    %v133 = vpack.c.b16 %v118, %v117
    %v134 = vpack.c.b16 %v120, %v119
    %v135 = vpack.c.b16 %v122, %v121
    %v136 = vpack.c.b16 %v124, %v123
    %v137 = vpack.c.b16 %v126, %v125
    %v138 = vpack.c.b16 %v128, %v127
    %v139 = vpack.c.b16 %v130, %v129
    %v140 = vpack.c.b16 %v132, %v131
    %149 = vmatprep.subr.bf16.mxu0 0
    %150 = vmatpush1.bf16.msra.mxu0 %v133
    %151 = vmatprep.subr.bf16.mxu0 0
    %152 = vmatpush1.bf16.msra.mxu0 %v134
    %153 = vmatprep.subr.bf16.mxu0 0
    %154 = vmatpush1.bf16.msra.mxu0 %v135
    %155 = vmatprep.subr.bf16.mxu0 0
    %156 = vmatpush1.bf16.msra.mxu0 %v136
    %157 = vmatprep.subr.bf16.mxu0 0
    %158 = vmatpush1.bf16.msra.mxu0 %v137
    %159 = vmatprep.subr.bf16.mxu0 0
    %160 = vmatpush1.bf16.msra.mxu0 %v138
    %161 = vmatprep.subr.bf16.mxu0 0
    %162 = vmatpush1.bf16.msra.mxu0 %v139
    %163 = vmatprep.subr.bf16.mxu0 0
    %164 = vmatpush1.bf16.msra.mxu0 %v140
    %165 = vmatprep.subr.bf16.mxu0 0
    %166 = vmatpush1.bf16.msra.mxu0 0
    %167 = vmatprep.subr.bf16.mxu0 0
    %168 = vmatpush1.bf16.msra.mxu0 0
    %169 = vmatprep.subr.bf16.mxu0 0
    %170 = vmatpush1.bf16.msra.mxu0 0
    %171 = vmatprep.subr.bf16.mxu0 0
    %172 = vmatpush1.bf16.msra.mxu0 0
    %173 = vmatprep.subr.bf16.mxu0 0
    %174 = vmatpush1.bf16.msra.mxu0 0
    %175 = vmatprep.subr.bf16.mxu0 0
    %176 = vmatpush1.bf16.msra.mxu0 0
    %177 = vmatprep.subr.bf16.mxu0 0
    %178 = vmatpush1.bf16.msra.mxu0 0
    %179 = vmatprep.subr.bf16.mxu0 0
    %180 = vmatpush1.bf16.msra.mxu0 0
    %181 = vmatprep.mubr.bf16.mxu0 0
    %182 = vmatmul.mubr.bf16.gmra.mrb[0].mxu0 %v77
    %v183 = vpop.f32.mrb[0].mxu0
    %v184 = vadd.f32 %v99, %v183
    %v185 = vpop.f32.mrb[0].mxu0
    %v186 = vpop.f32.mrb[0].mxu0
    %v187 = vadd.f32 %v99, %v186
    %v188 = vpop.f32.mrb[0].mxu0
    %189 = vdwg.mxu0
    %v190 = vmax.f32 %v184, 0.0
    %v191 = vmax.f32 %v187, 0.0
    %v192 = vld [vmem:[#allocation2] sm:$0xff]
    %v193 = vld [vmem:[#allocation2 + $0x8] sm:$0xff]
    %v194 = vpack.c.bf16 %v191, %v190
    %v195 = vld [vmem:[#allocation8] sm:$0xf]
    %v196 = vld [vmem:[#allocation8 + $0x4] sm:$0xf]
    %v197 = vld [vmem:[#allocation8 + $0x8] sm:$0xf]
    %v198 = vld [vmem:[#allocation8 + $0xc] sm:$0xf]
    %v199 = vld [vmem:[#allocation8 + $0x10] sm:$0xf]
    %v200 = vld [vmem:[#allocation8 + $0x14] sm:$0xf]
    %v201 = vld [vmem:[#allocation8 + $0x18] sm:$0xf]
    %v202 = vld [vmem:[#allocation8 + $0x1c] sm:$0xf]
    %v203 = vld [vmem:[#allocation8 + $0x20] sm:$0xf]
    %v204 = vld [vmem:[#allocation8 + $0x24] sm:$0xf]
    %v205 = vld [vmem:[#allocation8 + $0x28] sm:$0xf]
    %v206 = vld [vmem:[#allocation8 + $0x2c] sm:$0xf]
    %v207 = vld [vmem:[#allocation8 + $0x30] sm:$0xf]
    %v208 = vld [vmem:[#allocation8 + $0x34] sm:$0xf]
    %v209 = vld [vmem:[#allocation8 + $0x38] sm:$0xf]
    %v210 = vld [vmem:[#allocation8 + $0x3c] sm:$0xf]
    %v227 = vunpack.c.l.b16 %v195
    %v228 = vunpack.c.l.b16 %v196
    %v229 = vunpack.c.l.b16 %v197
    %v230 = vunpack.c.l.b16 %v198
    %v231 = vunpack.c.l.b16 %v199
    %v232 = vunpack.c.l.b16 %v200
    %v233 = vunpack.c.l.b16 %v201
    %v234 = vunpack.c.l.b16 %v202
    %v235 = vunpack.c.l.b16 %v203
    %v236 = vunpack.c.l.b16 %v204
    %v237 = vunpack.c.l.b16 %v205
    %v238 = vunpack.c.l.b16 %v206
    %v239 = vunpack.c.l.b16 %v207
    %v240 = vunpack.c.l.b16 %v208
    %v241 = vunpack.c.l.b16 %v209
    %v242 = vunpack.c.l.b16 %v210
    %v243 = vpack.c.b16 %v228, %v227
    %v244 = vpack.c.b16 %v230, %v229
    %v245 = vpack.c.b16 %v232, %v231
    %v246 = vpack.c.b16 %v234, %v233
    %v247 = vpack.c.b16 %v236, %v235
    %v248 = vpack.c.b16 %v238, %v237
    %v249 = vpack.c.b16 %v240, %v239
    %v250 = vpack.c.b16 %v242, %v241
    %259 = vmatprep.subr.bf16.mxu0 0
    %260 = vmatpush1.bf16.msra.mxu0 %v243
    %261 = vmatprep.subr.bf16.mxu0 0
    %262 = vmatpush1.bf16.msra.mxu0 %v244
    %263 = vmatprep.subr.bf16.mxu0 0
    %264 = vmatpush1.bf16.msra.mxu0 %v245
    %265 = vmatprep.subr.bf16.mxu0 0
    %266 = vmatpush1.bf16.msra.mxu0 %v246
    %267 = vmatprep.subr.bf16.mxu0 0
    %268 = vmatpush1.bf16.msra.mxu0 %v247
    %269 = vmatprep.subr.bf16.mxu0 0
    %270 = vmatpush1.bf16.msra.mxu0 %v248
    %271 = vmatprep.subr.bf16.mxu0 0
    %272 = vmatpush1.bf16.msra.mxu0 %v249
    %273 = vmatprep.subr.bf16.mxu0 0
    %274 = vmatpush1.bf16.msra.mxu0 %v250
    %275 = vmatprep.subr.bf16.mxu0 0
    %276 = vmatpush1.bf16.msra.mxu0 0
    %277 = vmatprep.subr.bf16.mxu0 0
    %278 = vmatpush1.bf16.msra.mxu0 0
    %279 = vmatprep.subr.bf16.mxu0 0
    %280 = vmatpush1.bf16.msra.mxu0 0
    %281 = vmatprep.subr.bf16.mxu0 0
    %282 = vmatpush1.bf16.msra.mxu0 0
    %283 = vmatprep.subr.bf16.mxu0 0
    %284 = vmatpush1.bf16.msra.mxu0 0
    %285 = vmatprep.subr.bf16.mxu0 0
    %286 = vmatpush1.bf16.msra.mxu0 0
    %287 = vmatprep.subr.bf16.mxu0 0
    %288 = vmatpush1.bf16.msra.mxu0 0
    %289 = vmatprep.subr.bf16.mxu0 0
    %290 = vmatpush1.bf16.msra.mxu0 0
    %291 = vmatprep.mubr.bf16.mxu0 0
    %292 = vmatmul.mubr.bf16.gmra.mrb[0].mxu0 %v194
    %v293 = vpop.f32.mrb[0].mxu0
    %v294 = vadd.f32 0.0, %v293
    %v295 = vpop.f32.mrb[0].mxu0
    %v296 = vpop.f32.mrb[0].mxu0
    %v297 = vadd.f32 0.0, %v296
    %v298 = vpop.f32.mrb[0].mxu0
    %299 = vdwg.mxu0
    %v300 = vadd.f32 %v192, %v294
    %v301 = vadd.f32 %v193, %v297
    %302 = vst [vmem:[#allocation2] sm:$0xff] %v300
    %303 = vst [vmem:[#allocation2 + $0x8] sm:$0xff] %v301
    // Predicated region
    $region46: #{tpu_custom_call.1} parent=1 // pred_check
      %p304 = pneg %p69
    $region47: #{tpu_custom_call.1} parent=1 // pred_check_branch
      %306 = sbr.rel (%p304) target = $region49
    $region48: #{tpu_custom_call.1} parent=1 // pred_region
      %v307 = vld [vmem:[#allocation2] sm:$0xff]
      %v308 = vld [vmem:[#allocation2 + $0x8] sm:$0xff]
      %v309 = vld [vmem:[%s4] sm:$0x1]
      %v311 = vlaneseq
      %v312 = vshrl.u32 %v311, 7
      %v313 = vsub.s32 0, %v312
      %v314 = vrot.slane %v309, %v313
      %v316 = vadd.f32 %v307, %v314
      %v317 = vadd.f32 %v308, %v314
      %v318 = vadd.f32 %v316, %v75
      %v319 = vadd.f32 %v317, %v76
      %320 = vadd.xlane.f32.xlu0 %v318
      %v321 = vpop.xlane.xlu0 %320
      %322 = vadd.xlane.f32.xlu0 %v319
      %v323 = vpop.xlane.xlu0 %322
      %v324 = vmul.f32 %v321, 0.03125
      %v325 = vmul.f32 %v323, 0.03125
      %v326 = vsub.f32 %v318, %v324
      %v327 = vsub.f32 %v319, %v325
      %v328 = vlaneseq
      %v329 = vand.u32 %v328, 127
      %vm330 = vcmp.lt.s32.totalorder %v329, 32
      %v331 = vsel %vm330, 1, 0
      %vm332 = vcmp.eq.s32.totalorder %v331, 1
      %v333 = vsel %vm332, %v326, 0.0
      %v334 = vsel %vm332, %v327, 0.0
      %v335 = vmul.f32 %v333, %v333
      %v336 = vmul.f32 %v334, %v334
      %337 = vadd.xlane.f32.xlu0 %v335
      %v338 = vpop.xlane.xlu0 %337
      %339 = vadd.xlane.f32.xlu0 %v336
      %v340 = vpop.xlane.xlu0 %339
      %v341 = vmul.f32 %v338, 0.03125
      %v342 = vmul.f32 %v340, 0.03125
      %v343 = vadd.f32 %v341, 1e-06
      %v344 = vadd.f32 %v342, 1e-06
      %v345 = vrsqrt.pop %v343
      %v346 = vrsqrt.pop %v344
      %v347 = vmul.f32 %v333, %v345
      %v348 = vmul.f32 %v334, %v346
      %v349 = vld [vmem:[%s5] sm:$0x1]
      %v351 = vlaneseq
      %v352 = vshrl.u32 %v351, 7
      %v353 = vsub.s32 0, %v352
      %v354 = vrot.slane %v349, %v353
      %v356 = vmul.f32 %v347, %v354
      %v357 = vmul.f32 %v348, %v354
      %v358 = vld [vmem:[%s6] sm:$0x1]
      %v360 = vlaneseq
      %v361 = vshrl.u32 %v360, 7
      %v362 = vsub.s32 0, %v361
      %v363 = vrot.slane %v358, %v362
      %v365 = vadd.f32 %v356, %v363
      %v366 = vadd.f32 %v357, %v363
      %367 = vst [vmem:[#allocation9] sm:$0xff] %v365
      %368 = vst [vmem:[#allocation9 + $0x8] sm:$0xff] %v366
    $region49: #{tpu_custom_call.1} parent=1 // pred_fallthru
      _
    // Predicated region
    $region50: #{tpu_custom_call.1} parent=1 // pred_check
      _
    $region51: #{tpu_custom_call.1} parent=1 // pred_check_branch
      %370 = sbr.rel (0) target = $region53
    $region52: #{tpu_custom_call.1} parent=1 // pred_region
      %s372 = ssub.s32 256, 256
      %373 = vsyncadd [#allocation5], %s372
      %s374 = sshll.u32 [#allocation9], 4
      %s375 = int_to_ptr.vmem [resolvable:$true] %s374
      %380 = dma.vmem_to_hbm [thread:$0]  %s375, 256, %s7, [#allocation5], 128, 128, 8
    $region53: #{tpu_custom_call.1} parent=1 // pred_fallthru
      _
    // Predicated region
    $region54: #{tpu_custom_call.1} parent=1 // pred_check
      _
    $region55: #{tpu_custom_call.1} parent=1 // pred_check_branch
      %382 = sbr.rel (0) target = $region57
    $region56: #{tpu_custom_call.1} parent=1 // pred_region
      %383 = dma.done [#allocation5], 256
    $region57: #{tpu_custom_call.1} parent=1 // pred_fallthru
      _
    %384 = vsyncpa [#allocation4], 1
    %385 = vsyncpa [#allocation7], 1
    %386 = vsyncpa [#allocation5], 1

</llo_original>
